<compile_context>
chip_gen: v7x
topology: tpu7x:2x2x1
jax: 0.10.0
libtpu: 0.0.40
codegen_flags: <defaults>
</compile_context>

<pallas_src>
import functools
import math

import jax
import jax.numpy as jnp
from jax.experimental import pallas as pl
from jax.experimental.pallas import tpu as pltpu

_LOG_T_EPS = math.log(1e-4)  # log of the one-hot clamp floor (compile-time constant)


def _round_up(x, m):
    return ((x + m - 1) // m) * m


def _sce_kernel(x_ref, tgt_ref, out_ref, *, alpha, beta, b_total, c_actual, tb):
    i = pl.program_id(0)

    x = x_ref[...].astype(jnp.float32)           # (TB, Cp): upcast in-kernel
    tgt = tgt_ref[...]                           # (TB, 1) int32 class indices
    tb_rows, c_pad = x.shape

    class_ids = jax.lax.broadcasted_iota(jnp.int32, (tb_rows, c_pad), 1)
    row_ids = jax.lax.broadcasted_iota(jnp.int32, (tb_rows, c_pad), 0)
    rows_left = b_total - i * tb                 # real rows in this tile
    valid = (class_ids < c_actual) & (row_ids < rows_left)
    valid_f = valid.astype(jnp.float32)
    one_hot = ((class_ids == tgt) & valid).astype(jnp.float32)

    # t_c == clip(one_hot, 1e-4, 1) on valid elements, 0 on padding.
    t_c = 1e-4 * valid_f + (1.0 - 1e-4) * one_hot
    # log(clip(one_hot, 1e-4, 1)) == log(1e-4) * (1 - one_hot); 0 on padding.
    log_t = _LOG_T_EPS * (valid_f - one_hot)

    # Guard OOB/padded lanes before clip/log so no NaN can leak into the sum.
    x_safe = jnp.where(valid, x, 1.0)
    x_c = jnp.clip(x_safe, 1e-7, 1.0)
    log_x = jnp.log(x_c)                         # the ONLY full-width transcendental

    # alpha*CE + beta*RCE fused elementwise; padding contributes exactly 0.
    contrib = -(alpha * (t_c * log_x) + beta * (x_c * log_t))
    partial = jnp.sum(contrib)                   # one 2-axis reduce per tile

    # Lane-dense (8,128) partial-sum block, disjoint per program -> "parallel"-safe.
    out_ref[...] = jnp.full((8, 128), partial, dtype=jnp.float32)


def _pick_tile_rows(b, c_pad):
    # ~<=4 MiB per x tile -> ~8 MiB double-buffered; safely under scoped-VMEM
    # defaults on v5e (16 MiB) and v6e/v7x (32 MiB), and well within v7x's
    # 64 MiB physical VMEM.
    cap = (4 * 1024 * 1024) // (c_pad * 4)
    cap = max(8, min(1024, (cap // 8) * 8))
    return b if b <= cap else cap


def symmetric_cross_entropy(x, target, alpha=1.0, beta=1.0, tile_rows=None):
    """x: (B, C) float (f32 or bf16 probabilities), target: (B,) int -> scalar f32."""
    b, c = x.shape
    c_pad = _round_up(c, 128)
    if c_pad != c:
        # Pad value 1.0: log(1)=0 and padded lanes are masked out of RCE in-kernel.
        x = jnp.pad(x, ((0, 0), (0, c_pad - c)), constant_values=1.0)
    tgt2d = target.astype(jnp.int32).reshape(b, 1)

    tb = int(tile_rows) if tile_rows is not None else _pick_tile_rows(b, c_pad)
    num_tiles = (b + tb - 1) // tb

    kernel = functools.partial(
        _sce_kernel, alpha=float(alpha), beta=float(beta),
        b_total=b, c_actual=c, tb=tb)

    partials = pl.pallas_call(
        kernel,
        out_shape=jax.ShapeDtypeStruct((num_tiles * 8, 128), jnp.float32),
        grid=(num_tiles,),
        in_specs=[
            pl.BlockSpec((tb, c_pad), lambda i: (i, 0)),
            pl.BlockSpec((tb, 1), lambda i: (i, 0)),
        ],
        out_specs=pl.BlockSpec((8, 128), lambda i: (i, 0)),
        compiler_params=pltpu.CompilerParams(
            dimension_semantics=("parallel",),
        ),
    )(x, tgt2d)

    per_tile = partials.reshape(num_tiles, 8, 128)[:, 0, 0]
    return jnp.sum(per_tile) / jnp.float32(b)


def _reference(x, target, alpha=1.0, beta=1.0):
    """Pure-JAX reference mirroring the PyTorch forward."""
    b, c = x.shape
    one_hot = jax.nn.one_hot(target, c, dtype=jnp.float32)
    x_c = jnp.clip(x.astype(jnp.float32), 1e-07, 1.0)
    t_c = jnp.clip(one_hot, 0.0001, 1.0)
    ce = jnp.mean(-jnp.sum(t_c * jnp.log(x_c), axis=1))
    rce = jnp.mean(-jnp.sum(x_c * jnp.log(t_c), axis=1))
    return alpha * ce + beta * rce


if __name__ == "__main__":
    key = jax.random.PRNGKey(0)
    k1, k2, k3, k4 = jax.random.split(key, 4)

    # Case 1: shapes implied by the module (batch=8, num_classes=32).
    B, C = 8, 32
    probs = jax.nn.softmax(jax.random.normal(k1, (B, C), dtype=jnp.float32), axis=-1)
    target = jax.random.randint(k2, (B,), 0, C, dtype=jnp.int32)
    loss = jax.block_until_ready(symmetric_cross_entropy(probs, target, 1.0, 1.0))
    ref = _reference(probs, target, 1.0, 1.0)
    assert jnp.allclose(loss, ref, rtol=1e-5, atol=1e-5), (loss, ref)

    # Case 2: multi-tile grid with a ragged last tile (exercises batch masking
    # and non-default alpha/beta).
    B2, C2 = 20, 32
    probs2 = jax.nn.softmax(jax.random.normal(k3, (B2, C2), dtype=jnp.float32), axis=-1)
    target2 = jax.random.randint(k4, (B2,), 0, C2, dtype=jnp.int32)
    loss2 = jax.block_until_ready(
        symmetric_cross_entropy(probs2, target2, alpha=0.5, beta=2.0, tile_rows=8))
    ref2 = _reference(probs2, target2, alpha=0.5, beta=2.0)
    assert jnp.allclose(loss2, ref2, rtol=1e-5, atol=1e-5), (loss2, ref2)

    print("KERNEL_OK")
</pallas_src>

<mosaic_0001>
module attributes {stable_mosaic.version = 11 : i64} {
  func.func @_sce_kernel(%arg0: i32, %arg1: memref<8x128xf32, #tpu.memory_space<vmem>>, %arg2: memref<8x1xi32, #tpu.memory_space<vmem>>, %arg3: memref<8x128xf32, #tpu.memory_space<vmem>>) attributes {dimension_semantics = [#tpu.dimension_semantics<parallel>], iteration_bounds = array<i64: 1>, scalar_prefetch = 0 : i64, scratch_operands = 0 : i64, tpu.core_type = #tpu.core_type<tc>, window_params = [{transform_indices = @transform_0, window_bounds = array<i64: 8, 128>}, {transform_indices = @transform_1, window_bounds = array<i64: 8, 1>}, {transform_indices = @transform_2, window_bounds = array<i64: 8, 128>}]} {
    %c0 = arith.constant 0 : index
    %c0_0 = arith.constant 0 : index
    %0 = vector.load %arg1[%c0, %c0_0] : memref<8x128xf32, #tpu.memory_space<vmem>>, vector<8x128xf32>
    %c0_1 = arith.constant 0 : index
    %c0_2 = arith.constant 0 : index
    %1 = vector.load %arg2[%c0_1, %c0_2] : memref<8x1xi32, #tpu.memory_space<vmem>>, vector<8x1xi32>
    %2 = tpu.iota {dimensions = array<i32: 1>} : vector<8x128xi32>
    %3 = tpu.iota {dimensions = array<i32: 0>} : vector<8x128xi32>
    %c8_i32 = arith.constant 8 : i32
    %4 = arith.muli %arg0, %c8_i32 : i32
    %c8_i32_3 = arith.constant 8 : i32
    %5 = arith.subi %c8_i32_3, %4 : i32
    %c32_i32 = arith.constant 32 : i32
    %6 = vector.broadcast %c32_i32 : i32 to vector<8x128xi32>
    %7 = arith.cmpi slt, %2, %6 : vector<8x128xi32>
    %8 = vector.broadcast %5 : i32 to vector<8x128xi32>
    %9 = arith.cmpi slt, %3, %8 : vector<8x128xi32>
    %10 = arith.andi %7, %9 : vector<8x128xi1>
    %11 = arith.extui %10 : vector<8x128xi1> to vector<8x128xi32>
    %12 = arith.sitofp %11 : vector<8x128xi32> to vector<8x128xf32>
    %13 = vector.broadcast %1 : vector<8x1xi32> to vector<8x128xi32>
    %14 = arith.cmpi eq, %2, %13 : vector<8x128xi32>
    %15 = arith.andi %14, %10 : vector<8x128xi1>
    %16 = arith.extui %15 : vector<8x128xi1> to vector<8x128xi32>
    %17 = arith.sitofp %16 : vector<8x128xi32> to vector<8x128xf32>
    %cst = arith.constant 9.99999974E-5 : f32
    %18 = vector.broadcast %cst : f32 to vector<8x128xf32>
    %19 = arith.mulf %18, %12 : vector<8x128xf32>
    %cst_4 = arith.constant 0.999899983 : f32
    %20 = vector.broadcast %cst_4 : f32 to vector<8x128xf32>
    %21 = arith.mulf %20, %17 : vector<8x128xf32>
    %22 = arith.addf %19, %21 : vector<8x128xf32>
    %23 = arith.subf %12, %17 : vector<8x128xf32>
    %cst_5 = arith.constant -9.21034049 : f32
    %24 = vector.broadcast %cst_5 : f32 to vector<8x128xf32>
    %25 = arith.mulf %24, %23 : vector<8x128xf32>
    %cst_6 = arith.constant 1.000000e+00 : f32
    %26 = vector.broadcast %cst_6 : f32 to vector<8x128xf32>
    %27 = arith.select %10, %0, %26 : vector<8x128xi1>, vector<8x128xf32>
    %cst_7 = arith.constant 1.000000e-07 : f32
    %cst_8 = arith.constant 1.000000e+00 : f32
    %28 = vector.broadcast %cst_7 : f32 to vector<8x128xf32>
    %29 = arith.maximumf %28, %27 : vector<8x128xf32>
    %30 = vector.broadcast %cst_8 : f32 to vector<8x128xf32>
    %31 = arith.minimumf %30, %29 : vector<8x128xf32>
    %32 = math.log %31 : vector<8x128xf32>
    %33 = arith.mulf %22, %32 : vector<8x128xf32>
    %cst_9 = arith.constant 1.000000e+00 : f32
    %34 = vector.broadcast %cst_9 : f32 to vector<8x128xf32>
    %35 = arith.mulf %34, %33 : vector<8x128xf32>
    %36 = arith.mulf %31, %25 : vector<8x128xf32>
    %cst_10 = arith.constant 1.000000e+00 : f32
    %37 = vector.broadcast %cst_10 : f32 to vector<8x128xf32>
    %38 = arith.mulf %37, %36 : vector<8x128xf32>
    %39 = arith.addf %35, %38 : vector<8x128xf32>
    %cst_11 = arith.constant 0.000000e+00 : f32
    %40 = vector.broadcast %cst_11 : f32 to vector<8x128xf32>
    %41 = arith.subf %40, %39 : vector<8x128xf32>
    %42 = vector.shape_cast %41 : vector<8x128xf32> to vector<1x8x128xf32>
    %cst_12 = arith.constant dense<0.000000e+00> : vector<1xf32>
    %43 = vector.multi_reduction <add>, %42, %cst_12 [1, 2] : vector<1x8x128xf32> to vector<1xf32>
    %44 = vector.shape_cast %43 : vector<1xf32> to vector<1x1x1xf32>
    %45 = vector.extract %44[0, 0, 0] : f32 from vector<1x1x1xf32>
    %46 = vector.broadcast %45 : f32 to vector<8x128xf32>
    %c0_13 = arith.constant 0 : index
    %c0_14 = arith.constant 0 : index
    %47 = vector.load %arg3[%c0_13, %c0_14] : memref<8x128xf32, #tpu.memory_space<vmem>>, vector<8x128xf32>
    tpu.vector_store %arg3[%c0_13, %c0_14], %46 {strides = array<i32>} : memref<8x128xf32, #tpu.memory_space<vmem>>, vector<8x128xf32>,
    return
  }
  func.func @transform_0(%arg0: i32) -> (i32, i32) {
    %c0_i32 = arith.constant 0 : i32
    %c0_i32_0 = arith.constant 0 : i32
    return %arg0, %c0_i32 : i32, i32
  }
  func.func @transform_1(%arg0: i32) -> (i32, i32) {
    %c0_i32 = arith.constant 0 : i32
    %c0_i32_0 = arith.constant 0 : i32
    return %arg0, %c0_i32 : i32, i32
  }
  func.func @transform_2(%arg0: i32) -> (i32, i32) {
    %c0_i32 = arith.constant 0 : i32
    %c0_i32_0 = arith.constant 0 : i32
    return %arg0, %c0_i32 : i32, i32
  }
}

</mosaic_0001>

<llo_original>
// kernel: tpu_custom_call.1
$region0: #{tpu_custom_call.1}
  #allocation0 [shape = 'u32[]', space=smem, size = 0x4, offset = 0x4, fixed_abs, tag = 'smem constant byte address 0x4 - core index']
  #allocation1 [shape = 'u32[144,128]{1,0:T(1,128)}', space=vmem, size = 0x12000, scoped, tag = 'internal scratch']
  %s0 = inlined_call_operand.vmem [shape: f32[8,128], index: 0, kind: input, shape index: {}]
  %s1 = inlined_call_operand.vmem [shape: s32[8,1], index: 1, kind: input, shape index: {}]
  %s2 = inlined_call_operand.hbm [shape: f32[8,128], index: 2, kind: output, shape index: {}]
  %s3 = sld [smem:[#allocation0]]
  $region18: #{tpu_custom_call.1} parent=0
    _
  %s5 = ssub.s32 1, %s3
  %s6 = scalar_select 0, %s5, %s3
  $region1: #{tpu_custom_call.1} parent=0
    #allocation2 [shape = 'u8[4096]{0}', space=vmem, size = 0x1000, scoped, tag = 'output window, operand 0, single buffered']
    #allocation3 [shape = 's32[1]{0}', space=sflag, size = 0x4, scoped, tag = 'scoped memory for tpu_custom_call.1']
    %7 = vsyncpa [#allocation3], 0
    // Predicated region
    $region2: #{tpu_custom_call.1} parent=1 // pred_check
      _
    $region3: #{tpu_custom_call.1} parent=1 // pred_check_branch
      %9 = sbr.rel (0) target = $region5
    $region4: #{tpu_custom_call.1} parent=1 // pred_region
      _
    $region5: #{tpu_custom_call.1} parent=1 // pred_fallthru
      _
    // Predicated region
    $region6: #{tpu_custom_call.1} parent=1 // pred_check
      _
    $region7: #{tpu_custom_call.1} parent=1 // pred_check_branch
      %11 = sbr.rel (0) target = $region9
    $region8: #{tpu_custom_call.1} parent=1 // pred_region
      _
    $region9: #{tpu_custom_call.1} parent=1 // pred_fallthru
      _
    %v12 = vld [vmem:[%s0] sm:$0xff]
    %v13 = vld [vmem:[%s1] sm:$0xff]
    %v14 = vlaneseq
    %v15 = vand.u32 %v14, 127
    %v16 = vlaneseq
    %v17 = vshrl.u32 %v16, 7
    %s18 = smul.u32 0, 8
    %s19 = ssub.s32 8, %s18
    %vm20 = vcmp.lt.s32.totalorder %v15, 32
    %v21 = vstv %s19
    %vm22 = vcmp.lt.s32.totalorder %v17, %v21
    %vm23 = vmand %vm20, %vm22
    %v24 = vsel %vm23, 1, 0
    %v25 = vcvt.s32.f32 %v24
    %26 = vset.pattern.permute.xlu0 0
    %27 = vperm.xlu0 %26, %v13
    %v28 = vpop.permute.xlu0 %27
    %vm29 = vcmp.eq.s32.totalorder %v15, %v28
    %vm30 = vmand %vm29, %vm23
    %v31 = vsel %vm30, 1, 0
    %v32 = vcvt.s32.f32 %v31
    %v33 = vmul.f32 %v25, 0.0001
    %v34 = vmul.f32 %v32, 0.9999
    %v35 = vadd.f32 %v33, %v34
    %v36 = vsub.f32 %v25, %v32
    %v37 = vmul.f32 %v36, -9.2103405
    %v38 = vsel %vm23, %v12, 1.0
    %v39 = vmax.f32 %v38, 1e-07
    %v40 = vmin.f32 %v39, 1.0
    %v41 = vlog2.pop %v40
    %v42 = vmul.f32 %v41, 0.6931472
    %v43 = vmul.f32 %v35, %v42
    %v44 = vmul.f32 %v40, %v37
    %v45 = vadd.f32 %v43, %v44
    %v46 = vsub.f32 0.0, %v45
    %47 = vadd.xlane.f32.xlu0 %v46
    %v48 = vpop.xlane.xlu0 %47
    %v49 = vrot.slane %v48, 4
    %v50 = vadd.f32 %v48, %v49
    %v51 = vrot.slane %v50, 2
    %v52 = vadd.f32 %v50, %v51
    %v53 = vrot.slane %v52, 1
    %v54 = vadd.f32 %v52, %v53
    %s55 = vtos %v54
    %v56 = vstv %s55
    %57 = vst [vmem:[#allocation2] sm:$0xff] %v56
    // Predicated region
    $region10: #{tpu_custom_call.1} parent=1 // pred_check
      _
    $region11: #{tpu_custom_call.1} parent=1 // pred_check_branch
      %59 = sbr.rel (0) target = $region13
    $region12: #{tpu_custom_call.1} parent=1 // pred_region
      %s61 = ssub.s32 128, 128
      %62 = vsyncadd [#allocation3], %s61
      %s64 = sshll.u32 [#allocation2], 4
      %s65 = int_to_ptr.vmem [resolvable:$true] %s64
      %67 = dma.vmem_to_hbm [thread:$0]  %s65, 128, %s2, [#allocation3]
    $region13: #{tpu_custom_call.1} parent=1 // pred_fallthru
      _
    // Predicated region
    $region14: #{tpu_custom_call.1} parent=1 // pred_check
      _
    $region15: #{tpu_custom_call.1} parent=1 // pred_check_branch
      %69 = sbr.rel (0) target = $region17
    $region16: #{tpu_custom_call.1} parent=1 // pred_region
      %70 = dma.done [#allocation3], 128
    $region17: #{tpu_custom_call.1} parent=1 // pred_fallthru
      _
    %71 = vsyncpa [#allocation3], 1

</llo_original>
